<compile_context>
chip_gen: v7x
topology: tpu7x:2x2x1
jax: 0.10.0
libtpu: 0.0.40
codegen_flags: <defaults>
</compile_context>

<pallas_src>
import functools

import jax
import jax.numpy as jnp
from jax import lax
from jax.experimental import pallas as pl
from jax.experimental.pallas import tpu as pltpu


def _layernorm_kernel(x_ref, gamma_ref, beta_ref, o_ref, *, eps):
    # x_ref: (1, tn, D); gamma/beta: (1, D); o_ref: (1, tn, D)
    x = x_ref[0].astype(jnp.float32)
    mean = jnp.mean(x, axis=-1, keepdims=True)
    var = jnp.mean((x - mean) ** 2, axis=-1, keepdims=True)  # biased, like PyTorch
    xn = (x - mean) * lax.rsqrt(var + eps)
    xn = xn * gamma_ref[0].astype(jnp.float32) + beta_ref[0].astype(jnp.float32)
    o_ref[0] = xn.astype(o_ref.dtype)


def _flash_attn_kernel(xq_ref, xkv_ref, wq_ref, wk_ref, wv_ref, wo_ref,
                       o_ref, q_scr, m_scr, l_scr, acc_scr, out_scr):
    # grid = (B, num_q_tiles, heads, num_kv_tiles); kv axis is innermost.
    # xq_ref:  (1, tq, D)   normalized rows for the query tile
    # xkv_ref: (1, tk, D)   normalized rows for the kv tile
    # wq/wk/wv_ref: (1, D, dh) per-head projection weights (scale folded into wq)
    # wo_ref:  (1, dh, D)   per-head slice of the output projection
    # o_ref:   (1, tq, D)
    h = pl.program_id(2)
    ki = pl.program_id(3)
    nh = pl.num_programs(2)
    nk = pl.num_programs(3)

    @pl.when(jnp.logical_and(h == 0, ki == 0))
    def _():
        out_scr[...] = jnp.zeros_like(out_scr)

    @pl.when(ki == 0)
    def _():
        m_scr[...] = jnp.full_like(m_scr, -jnp.inf)
        l_scr[...] = jnp.zeros_like(l_scr)
        acc_scr[...] = jnp.zeros_like(acc_scr)
        # Query projection for this (batch, q-tile, head); reused across kv tiles.
        q_scr[...] = jnp.dot(xq_ref[0], wq_ref[0],
                             preferred_element_type=jnp.float32)

    # K / V projections for this head and kv tile (weights at native dtype).
    xkv = xkv_ref[0]
    k = jnp.dot(xkv, wk_ref[0], preferred_element_type=jnp.float32)   # (tk, dh)
    v = jnp.dot(xkv, wv_ref[0], preferred_element_type=jnp.float32)   # (tk, dh)

    # Scores: contraction over dh without materializing a transpose.
    s = lax.dot_general(q_scr[...], k, (((1,), (1,)), ((), ())),
                        preferred_element_type=jnp.float32)           # (tq, tk)

    # Online softmax update.
    m_prev = m_scr[...]
    m_new = jnp.maximum(m_prev, jnp.max(s, axis=-1, keepdims=True))
    alpha = jnp.exp(m_prev - m_new)
    p = jnp.exp(s - m_new)
    l_scr[...] = alpha * l_scr[...] + jnp.sum(p, axis=-1, keepdims=True)
    acc_scr[...] = alpha * acc_scr[...] + jnp.dot(
        p, v, preferred_element_type=jnp.float32)
    m_scr[...] = m_new

    @pl.when(ki == nk - 1)
    def _():
        # Finalize this head and fold its output-projection contribution in.
        o_head = acc_scr[...] * pl.reciprocal(l_scr[...], approx=True)  # (tq, dh)
        out_scr[...] += jnp.dot(o_head, wo_ref[0],
                                preferred_element_type=jnp.float32)     # (tq, D)

    @pl.when(jnp.logical_and(h == nh - 1, ki == nk - 1))
    def _():
        o_ref[0] = out_scr[...].astype(o_ref.dtype)


def attention_pallas(x, gamma, beta, w_qkv, w_out, *, heads, dim_head,
                     eps=1e-5, q_tile=256, kv_tile=256, n_tile=512):
    B, N, D = x.shape
    inner = heads * dim_head
    assert w_qkv.shape == (D, 3 * inner)
    assert w_out.shape == (inner, D)

    scale = dim_head ** (-0.5)

    # Host-side (one-time) per-head weight layouts — no lane slicing in-kernel.
    def per_head(w):  # (D, inner) -> (H, D, dh)
        return w.reshape(D, heads, dim_head).transpose(1, 0, 2)

    w_q = per_head(w_qkv[:, :inner] * scale)        # scale folded into q weights
    w_k = per_head(w_qkv[:, inner:2 * inner])
    w_v = per_head(w_qkv[:, 2 * inner:])
    w_o = w_out.reshape(heads, dim_head, D)         # (H, dh, D)

    # ---- Kernel 1: LayerNorm ----
    tn = min(N, n_tile)
    assert N % tn == 0, "sequence length must divide the LN tile"
    xn = pl.pallas_call(
        functools.partial(_layernorm_kernel, eps=eps),
        out_shape=jax.ShapeDtypeStruct((B, N, D), x.dtype),
        grid_spec=pltpu.PrefetchScalarGridSpec(
            num_scalar_prefetch=0,
            grid=(B, N // tn),
            in_specs=[
                pl.BlockSpec((1, tn, D), lambda b, i: (b, i, 0)),
                pl.BlockSpec((1, D), lambda b, i: (0, 0)),
                pl.BlockSpec((1, D), lambda b, i: (0, 0)),
            ],
            out_specs=pl.BlockSpec((1, tn, D), lambda b, i: (b, i, 0)),
        ),
        compiler_params=pltpu.CompilerParams(
            dimension_semantics=("parallel", "parallel")),
    )(x, gamma, beta)

    # ---- Kernel 2: fused QKV proj + flash attention + output proj ----
    tq = min(N, q_tile)
    tk = min(N, kv_tile)
    assert N % tq == 0 and N % tk == 0, "sequence length must divide the tiles"

    out = pl.pallas_call(
        _flash_attn_kernel,
        out_shape=jax.ShapeDtypeStruct((B, N, D), x.dtype),
        grid_spec=pltpu.PrefetchScalarGridSpec(
            num_scalar_prefetch=0,
            grid=(B, N // tq, heads, N // tk),
            in_specs=[
                pl.BlockSpec((1, tq, D), lambda b, qi, h, ki: (b, qi, 0)),       # xn (q rows)
                pl.BlockSpec((1, tk, D), lambda b, qi, h, ki: (b, ki, 0)),       # xn (kv rows)
                pl.BlockSpec((1, D, dim_head), lambda b, qi, h, ki: (h, 0, 0)),  # w_q[h]
                pl.BlockSpec((1, D, dim_head), lambda b, qi, h, ki: (h, 0, 0)),  # w_k[h]
                pl.BlockSpec((1, D, dim_head), lambda b, qi, h, ki: (h, 0, 0)),  # w_v[h]
                pl.BlockSpec((1, dim_head, D), lambda b, qi, h, ki: (h, 0, 0)),  # w_o[h]
            ],
            out_specs=pl.BlockSpec((1, tq, D), lambda b, qi, h, ki: (b, qi, 0)),
            scratch_shapes=[
                pltpu.VMEM((tq, dim_head), jnp.float32),   # q for current head
                pltpu.VMEM((tq, 1), jnp.float32),          # running max
                pltpu.VMEM((tq, 1), jnp.float32),          # running denominator
                pltpu.VMEM((tq, dim_head), jnp.float32),   # attention accumulator
                pltpu.VMEM((tq, D), jnp.float32),          # output accumulator over heads
            ],
        ),
        compiler_params=pltpu.CompilerParams(
            dimension_semantics=("parallel", "parallel", "arbitrary", "arbitrary")),
    )(xn, xn, w_q, w_k, w_v, w_o)
    return out


def attention_ref(x, gamma, beta, w_qkv, w_out, *, heads, dim_head):
    # Pure-JAX reference mirroring the PyTorch forward.
    x32 = x.astype(jnp.float32)
    mean = jnp.mean(x32, -1, keepdims=True)
    var = jnp.mean((x32 - mean) ** 2, -1, keepdims=True)
    xn = (x32 - mean) / jnp.sqrt(var + 1e-5) * gamma + beta
    qkv = xn @ w_qkv.astype(jnp.float32)
    q, k, v = jnp.split(qkv, 3, axis=-1)
    B, N, _ = x.shape

    def split_heads(t):
        return t.reshape(B, N, heads, dim_head).transpose(0, 2, 1, 3)
    q, k, v = map(split_heads, (q, k, v))
    dots = jnp.einsum("bhnd,bhmd->bhnm", q, k) * (dim_head ** -0.5)
    attn = jax.nn.softmax(dots, axis=-1)
    out = jnp.einsum("bhnm,bhmd->bhnd", attn, v)
    out = out.transpose(0, 2, 1, 3).reshape(B, N, heads * dim_head)
    return (out @ w_out.astype(jnp.float32)).astype(x.dtype)


if __name__ == "__main__":
    B, N, D = 2, 8, 32
    heads, dim_head = 4, 16
    inner = heads * dim_head

    key = jax.random.PRNGKey(0)
    kx, kq, ko = jax.random.split(key, 3)
    x = jax.random.normal(kx, (B, N, D), dtype=jnp.float32)

    # Deterministic parameter init (LayerNorm: ones/zeros; Linear: small random).
    gamma = jnp.ones((1, D), dtype=jnp.float32)
    beta = jnp.zeros((1, D), dtype=jnp.float32)
    w_qkv = jax.random.normal(kq, (D, 3 * inner), dtype=jnp.float32) * (D ** -0.5)
    w_out = jax.random.normal(ko, (inner, D), dtype=jnp.float32) * (inner ** -0.5)

    out = attention_pallas(x, gamma, beta, w_qkv, w_out,
                           heads=heads, dim_head=dim_head)
    out = jax.block_until_ready(out)

    ref = attention_ref(x, gamma, beta, w_qkv, w_out,
                        heads=heads, dim_head=dim_head)
    # Tolerance loosened for pl.reciprocal(approx=True) and folded-scale numerics.
    assert jnp.allclose(out, ref, atol=1e-2, rtol=1e-2), "mismatch vs reference"
    print("KERNEL_OK")
</pallas_src>

<mosaic_0001>
module attributes {stable_mosaic.version = 11 : i64} {
  func.func @_layernorm_kernel(%arg0: i32, %arg1: i32, %arg2: memref<1x8x32xf32, #tpu.memory_space<vmem>>, %arg3: memref<1x32xf32, #tpu.memory_space<vmem>>, %arg4: memref<1x32xf32, #tpu.memory_space<vmem>>, %arg5: memref<1x8x32xf32, #tpu.memory_space<vmem>>) attributes {dimension_semantics = [#tpu.dimension_semantics<parallel>, #tpu.dimension_semantics<parallel>], iteration_bounds = array<i64: 2, 1>, scalar_prefetch = 0 : i64, scratch_operands = 0 : i64, tpu.core_type = #tpu.core_type<tc>, window_params = [{transform_indices = @transform_0, window_bounds = array<i64: 1, 8, 32>}, {pipeline_mode = #tpu.pipeline_mode<synchronous>, transform_indices = @transform_1, window_bounds = array<i64: 1, 32>}, {pipeline_mode = #tpu.pipeline_mode<synchronous>, transform_indices = @transform_2, window_bounds = array<i64: 1, 32>}, {transform_indices = @transform_3, window_bounds = array<i64: 1, 8, 32>}]} {
    %c0 = arith.constant 0 : index
    %c0_0 = arith.constant 0 : index
    %c0_1 = arith.constant 0 : index
    %0 = vector.load %arg2[%c0, %c0_0, %c0_1] : memref<1x8x32xf32, #tpu.memory_space<vmem>>, vector<1x8x32xf32>
    %1 = vector.shape_cast %0 : vector<1x8x32xf32> to vector<8x32xf32>
    %cst = arith.constant dense<0.000000e+00> : vector<8xf32>
    %2 = vector.multi_reduction <add>, %1, %cst [1] : vector<8x32xf32> to vector<8xf32>
    %3 = vector.shape_cast %2 : vector<8xf32> to vector<8x1xf32>
    %cst_2 = arith.constant 3.200000e+01 : f32
    %4 = vector.broadcast %cst_2 : f32 to vector<8x1xf32>
    %5 = arith.divf %3, %4 : vector<8x1xf32>
    %6 = vector.broadcast %5 : vector<8x1xf32> to vector<8x32xf32>
    %7 = arith.subf %1, %6 : vector<8x32xf32>
    %8 = arith.mulf %7, %7 : vector<8x32xf32>
    %cst_3 = arith.constant dense<0.000000e+00> : vector<8xf32>
    %9 = vector.multi_reduction <add>, %8, %cst_3 [1] : vector<8x32xf32> to vector<8xf32>
    %10 = vector.shape_cast %9 : vector<8xf32> to vector<8x1xf32>
    %cst_4 = arith.constant 3.200000e+01 : f32
    %11 = vector.broadcast %cst_4 : f32 to vector<8x1xf32>
    %12 = arith.divf %10, %11 : vector<8x1xf32>
    %13 = vector.broadcast %5 : vector<8x1xf32> to vector<8x32xf32>
    %14 = arith.subf %1, %13 : vector<8x32xf32>
    %cst_5 = arith.constant 9.99999974E-6 : f32
    %15 = vector.broadcast %cst_5 : f32 to vector<8x1xf32>
    %16 = arith.addf %12, %15 : vector<8x1xf32>
    %17 = math.rsqrt %16 : vector<8x1xf32>
    %18 = vector.broadcast %17 : vector<8x1xf32> to vector<8x32xf32>
    %19 = arith.mulf %14, %18 : vector<8x32xf32>
    %c0_6 = arith.constant 0 : index
    %c0_7 = arith.constant 0 : index
    %20 = vector.load %arg3[%c0_6, %c0_7] : memref<1x32xf32, #tpu.memory_space<vmem>>, vector<1x32xf32>
    %21 = vector.shape_cast %20 : vector<1x32xf32> to vector<32xf32>
    %22 = vector.shape_cast %21 : vector<32xf32> to vector<1x32xf32>
    %23 = vector.broadcast %22 : vector<1x32xf32> to vector<8x32xf32>
    %24 = arith.mulf %19, %23 : vector<8x32xf32>
    %c0_8 = arith.constant 0 : index
    %c0_9 = arith.constant 0 : index
    %25 = vector.load %arg4[%c0_8, %c0_9] : memref<1x32xf32, #tpu.memory_space<vmem>>, vector<1x32xf32>
    %26 = vector.shape_cast %25 : vector<1x32xf32> to vector<32xf32>
    %27 = vector.shape_cast %26 : vector<32xf32> to vector<1x32xf32>
    %28 = vector.broadcast %27 : vector<1x32xf32> to vector<8x32xf32>
    %29 = arith.addf %24, %28 : vector<8x32xf32>
    %c0_10 = arith.constant 0 : index
    %c0_11 = arith.constant 0 : index
    %c0_12 = arith.constant 0 : index
    %30 = vector.load %arg5[%c0_10, %c0_11, %c0_12] : memref<1x8x32xf32, #tpu.memory_space<vmem>>, vector<1x8x32xf32>
    %31 = vector.shape_cast %30 : vector<1x8x32xf32> to vector<8x32xf32>
    %32 = vector.shape_cast %29 : vector<8x32xf32> to vector<1x8x32xf32>
    tpu.vector_store %arg5[%c0_10, %c0_11, %c0_12], %32 {strides = array<i32>} : memref<1x8x32xf32, #tpu.memory_space<vmem>>, vector<1x8x32xf32>,
    return
  }
  func.func @transform_0(%arg0: i32, %arg1: i32) -> (i32, i32, i32) {
    %c0_i32 = arith.constant 0 : i32
    %c0_i32_0 = arith.constant 0 : i32
    return %arg0, %arg1, %c0_i32 : i32, i32, i32
  }
  func.func @transform_1(%arg0: i32, %arg1: i32) -> (i32, i32) {
    %c0_i32 = arith.constant 0 : i32
    %c0_i32_0 = arith.constant 0 : i32
    %c0_i32_1 = arith.constant 0 : i32
    return %c0_i32, %c0_i32_0 : i32, i32
  }
  func.func @transform_2(%arg0: i32, %arg1: i32) -> (i32, i32) {
    %c0_i32 = arith.constant 0 : i32
    %c0_i32_0 = arith.constant 0 : i32
    %c0_i32_1 = arith.constant 0 : i32
    return %c0_i32, %c0_i32_0 : i32, i32
  }
  func.func @transform_3(%arg0: i32, %arg1: i32) -> (i32, i32, i32) {
    %c0_i32 = arith.constant 0 : i32
    %c0_i32_0 = arith.constant 0 : i32
    return %arg0, %arg1, %c0_i32 : i32, i32, i32
  }
}

</mosaic_0001>

<llo_original>
// kernel: tpu_custom_call.1
$region0: #{tpu_custom_call.1}
  #allocation0 [shape = 'u32[]', space=smem, size = 0x4, offset = 0x4, fixed_abs, tag = 'smem constant byte address 0x4 - core index']
  #allocation1 [shape = 'u32[144,128]{1,0:T(1,128)}', space=vmem, size = 0x12000, scoped, tag = 'internal scratch']
  %s0 = inlined_call_operand.hbm [shape: f32[2,8,32], index: 0, kind: input, shape index: {}]
  %s1 = inlined_call_operand.vmem [shape: f32[1,32], index: 1, kind: input, shape index: {}]
  %s2 = inlined_call_operand.vmem [shape: f32[1,32], index: 2, kind: input, shape index: {}]
  %s3 = inlined_call_operand.hbm [shape: f32[2,8,32], index: 3, kind: output, shape index: {}]
  %s4 = sld [smem:[#allocation0]]
  $region49: #{tpu_custom_call.1} parent=0
    _
  %s6 = ssub.s32 1, %s4
  %s7 = scalar_select 0, %s6, %s4
  $region1: #{tpu_custom_call.1} parent=0
    #allocation2 [shape = 'u8[8192]{0}', space=vmem, size = 0x2000, scoped, tag = 'input window, operand 0']
    #allocation3 [shape = 's32[2]{0}', space=sflag, size = 0x8, scoped, tag = 'scoped memory for tpu_custom_call.1']
    #allocation4 [shape = 's32[2]{0}', space=sflag, size = 0x8, scoped, tag = 'scoped memory for tpu_custom_call.1']
    #allocation5 [shape = 'u8[8192]{0}', space=vmem, size = 0x2000, scoped, tag = 'output window, operand 0']
    %8 = vsyncpa [#allocation3], 0
    %s9 = scalar_lea.sflag [#allocation3], 1
    %10 = vsyncpa %s9, 0
    %11 = vsyncpa [#allocation4], 0
    %s12 = scalar_lea.sflag [#allocation4], 1
    %13 = vsyncpa %s12, 0
    loop: start=0, step=1, limit=4
    $region2: #{tpu_custom_call.1} parent=1 // loop_pre_header
      _
    $region3: #{tpu_custom_call.1} parent=1 // loop_header
      %s15 = sphi 0, %s19
      %p16 = scmp.ge.s32.totalorder %s15, 4
      %s22 = sphi 0, %s34
      %s23 = sphi 0, %s30
      %s24 = sphi 0, %s22
      %s25 = sphi 0, %s23
      %s26 = sphi 0, %s24
      %s27 = sphi 0, %s25
      %s39 = sphi 0, %s41
      %s42 = sphi 0, %s39
      %s43 = sphi 0, %s42
      %s59 = sphi 0, %s43
      %s63 = sphi 0, %s63
      %s65 = sphi 0, %s63
      %s66 = sphi 0, %s65
      %s80 = sphi 0, %s66
      %s84 = sphi 0, %s84
      %s86 = sphi 0, %s84
      %s87 = sphi 0, %s86
      %s101 = sphi 0, %s87
      %s109 = sphi 0, %s111
      %s112 = sphi 0, %s109
      %s113 = sphi 0, %s112
      %s129 = sphi 0, %s113
    $region4: #{tpu_custom_call.1} parent=1 // loop_header_branch
      %18 = sbr.rel (%p16) target = $region8
    $region5: #{tpu_custom_call.1} parent=1 // loop_body
      %s20 = ssub.s32 %s15, 1
      %s21 = ssub.s32 %s15, 2
      %s28 = sadd.s32 1, %s23
      %p29 = scmp.ge.s32.totalorder %s28, 1
      %s30 = scalar_select %p29, 0, %s28
      %s31 = sadd.s32 1, %s22
      %s32 = scalar_select %p29, %s31, %s22
      %p33 = scmp.ge.s32.totalorder %s32, 2
      %s34 = scalar_select %p33, 0, %s32
      %s35 = ssub.s32 %s22, %s34
      %s36 = ssub.s32 %s23, %s30
      %s37 = sor.u32 %s35, %s36
      %p38 = scmp.eq.s32.totalorder %s37, 0
      %s40 = sadd.s32 %s39, 1
      %s41 = scalar_select %p38, %s39, %s40
      %p44 = pneg %p38
      %p45 = scmp.eq.s32.totalorder %s15, 1
      %p46 = por %p44, %p45
      %p47 = scmp.ne.s32.totalorder %s39, %s42
      %p48 = scmp.eq.s32.totalorder %s15, 0
      %p49 = por %p47, %p48
      %p50 = scmp.ne.s32.totalorder %s39, %s42
      %p51 = scmp.eq.s32.totalorder %s20, 1
      %p52 = por %p50, %p51
      %p53 = scmp.ne.s32.totalorder %s42, %s43
      %p54 = scmp.eq.s32.totalorder %s20, 0
      %p55 = por %p53, %p54
      %p56 = scmp.ne.s32.totalorder %s42, %s43
      %p57 = scmp.eq.s32.totalorder %s21, 1
      %p58 = por %p56, %p57
      %p60 = scmp.ne.s32.totalorder %s43, %s59
      %p61 = scmp.eq.s32.totalorder %s21, 0
      %p62 = por %p60, %p61
      %s64 = sadd.s32 %s63, 1
      %p67 = scmp.eq.s32.totalorder %s15, 1
      %p68 = scmp.ne.s32.totalorder %s63, %s65
      %p69 = scmp.eq.s32.totalorder %s15, 0
      %p70 = por %p68, %p69
      %p71 = scmp.ne.s32.totalorder %s63, %s65
      %p72 = scmp.eq.s32.totalorder %s20, 1
      %p73 = por %p71, %p72
      %p74 = scmp.ne.s32.totalorder %s65, %s66
      %p75 = scmp.eq.s32.totalorder %s20, 0
      %p76 = por %p74, %p75
      %p77 = scmp.ne.s32.totalorder %s65, %s66
      %p78 = scmp.eq.s32.totalorder %s21, 1
      %p79 = por %p77, %p78
      %p81 = scmp.ne.s32.totalorder %s66, %s80
      %p82 = scmp.eq.s32.totalorder %s21, 0
      %p83 = por %p81, %p82
      %s85 = sadd.s32 %s84, 1
      %p88 = scmp.eq.s32.totalorder %s15, 1
      %p89 = scmp.ne.s32.totalorder %s84, %s86
      %p90 = scmp.eq.s32.totalorder %s15, 0
      %p91 = por %p89, %p90
      %p92 = scmp.ne.s32.totalorder %s84, %s86
      %p93 = scmp.eq.s32.totalorder %s20, 1
      %p94 = por %p92, %p93
      %p95 = scmp.ne.s32.totalorder %s86, %s87
      %p96 = scmp.eq.s32.totalorder %s20, 0
      %p97 = por %p95, %p96
      %p98 = scmp.ne.s32.totalorder %s86, %s87
      %p99 = scmp.eq.s32.totalorder %s21, 1
      %p100 = por %p98, %p99
      %p102 = scmp.ne.s32.totalorder %s87, %s101
      %p103 = scmp.eq.s32.totalorder %s21, 0
      %p104 = por %p102, %p103
      %s105 = ssub.s32 %s22, %s34
      %s106 = ssub.s32 %s23, %s30
      %s107 = sor.u32 %s105, %s106
      %p108 = scmp.eq.s32.totalorder %s107, 0
      %s110 = sadd.s32 %s109, 1
      %s111 = scalar_select %p108, %s109, %s110
      %p114 = pneg %p108
      %p115 = scmp.eq.s32.totalorder %s15, 1
      %p116 = por %p114, %p115
      %p117 = scmp.ne.s32.totalorder %s109, %s112
      %p118 = scmp.eq.s32.totalorder %s15, 0
      %p119 = por %p117, %p118
      %p120 = scmp.ne.s32.totalorder %s109, %s112
      %p121 = scmp.eq.s32.totalorder %s20, 1
      %p122 = por %p120, %p121
      %p123 = scmp.ne.s32.totalorder %s112, %s113
      %p124 = scmp.eq.s32.totalorder %s20, 0
      %p125 = por %p123, %p124
      %p126 = scmp.ne.s32.totalorder %s112, %s113
      %p127 = scmp.eq.s32.totalorder %s21, 1
      %p128 = por %p126, %p127
      %p130 = scmp.ne.s32.totalorder %s113, %s129
      %p131 = scmp.eq.s32.totalorder %s21, 0
      %p132 = por %p130, %p131
      %p133 = scmp.le.s32.totalorder 1, %s15
      %p134 = scmp.lt.s32.totalorder %s15, 3
      %p135 = pnand %p133, %p134
      %p136 = pneg %p135
      // Predicated region
      $region9: #{tpu_custom_call.1} parent=5 // pred_check
        _
      $region10: #{tpu_custom_call.1} parent=5 // pred_check_branch
        %138 = sbr.rel (%p135) target = $region12
      $region11: #{tpu_custom_call.1} parent=5 // pred_region
        %s139 = ssub.s32 %s15, 1
        // Predicated region
        $region13: #{tpu_custom_call.1} parent=11 // pred_check
          %p140 = pneg %p76
        $region14: #{tpu_custom_call.1} parent=11 // pred_check_branch
          %142 = sbr.rel (%p140) target = $region16
        $region15: #{tpu_custom_call.1} parent=11 // pred_region
          _
        $region16: #{tpu_custom_call.1} parent=11 // pred_fallthru
          _
        // Predicated region
        $region17: #{tpu_custom_call.1} parent=11 // pred_check
          %p143 = pneg %p97
        $region18: #{tpu_custom_call.1} parent=11 // pred_check_branch
          %145 = sbr.rel (%p143) target = $region20
        $region19: #{tpu_custom_call.1} parent=11 // pred_region
          _
        $region20: #{tpu_custom_call.1} parent=11 // pred_fallthru
          _
      $region12: #{tpu_custom_call.1} parent=5 // pred_fallthru
        _
      %p146 = scmp.lt.s32.totalorder %s15, 2
      // Predicated region
      $region21: #{tpu_custom_call.1} parent=5 // pred_check
        %p147 = pneg %p146
      $region22: #{tpu_custom_call.1} parent=5 // pred_check_branch
        %149 = sbr.rel (%p147) target = $region24
      $region23: #{tpu_custom_call.1} parent=5 // pred_region
        // Predicated region
        $region25: #{tpu_custom_call.1} parent=23 // pred_check
          %p150 = pneg %p49
        $region26: #{tpu_custom_call.1} parent=23 // pred_check_branch
          %152 = sbr.rel (%p150) target = $region28
        $region27: #{tpu_custom_call.1} parent=23 // pred_region
          %s153 = sand.u32 %s39, 1
          %s154 = scalar_lea.sflag [#allocation3], %s153
          %s155 = sand.u32 %s39, 1
          %s156 = smul.addr %s155, 8
          %s157 = scalar_lea.vmem [#allocation2], %s156
          %s159 = ssub.s32 128, 128
          %160 = vsyncadd %s154, %s159
          %s161 = sadd.s32 %s23, %s22
          %s162 = smul.addr %s161, 128
          %s163 = scalar_lea.hbm %s0, %s162
          %s165 = sshll.u32 %s157, 4
          %s166 = int_to_ptr.vmem [resolvable:$true] %s165
          %168 = dma.hbm_to_vmem [thread:$0]  %s163, 128, %s166, %s154
        $region28: #{tpu_custom_call.1} parent=23 // pred_fallthru
          _
      $region24: #{tpu_custom_call.1} parent=5 // pred_fallthru
        _
      %p169 = scmp.le.s32.totalorder 1, %s15
      %p170 = scmp.lt.s32.totalorder %s15, 3
      %p171 = pnand %p169, %p170
      %p172 = pneg %p171
      // Predicated region
      $region29: #{tpu_custom_call.1} parent=5 // pred_check
        _
      $region30: #{tpu_custom_call.1} parent=5 // pred_check_branch
        %174 = sbr.rel (%p171) target = $region32
      $region31: #{tpu_custom_call.1} parent=5 // pred_region
        %s175 = ssub.s32 %s15, 1
        %s176 = sand.u32 %s42, 1
        %s177 = scalar_lea.sflag [#allocation3], %s176
        %s178 = sand.u32 %s42, 1
        %s179 = smul.addr %s178, 8
        %s180 = scalar_lea.vmem [#allocation2], %s179
        // Predicated region
        $region33: #{tpu_custom_call.1} parent=31 // pred_check
          %p181 = pneg %p55
        $region34: #{tpu_custom_call.1} parent=31 // pred_check_branch
          %183 = sbr.rel (%p181) target = $region36
        $region35: #{tpu_custom_call.1} parent=31 // pred_region
          %184 = dma.done %s177, 128
        $region36: #{tpu_custom_call.1} parent=31 // pred_fallthru
          _
        %s185 = sand.u32 %s42, 1
        %s186 = scalar_lea.sflag [#allocation3], %s185
        %s187 = sand.u32 %s42, 1
        %s188 = smul.addr %s187, 8
        %s189 = scalar_lea.vmem [#allocation2], %s188
        %p190 = pneg %p55
        %p191 = pneg %p52
        %p192 = pneg %p76
        %p193 = pneg %p73
        %p194 = pneg %p97
        %p195 = pneg %p94
        %p196 = pneg %p125
        %p197 = pneg %p122
        %s198 = sand.u32 %s112, 1
        %s199 = scalar_lea.sflag [#allocation4], %s198
        %s200 = sand.u32 %s112, 1
        %s201 = smul.addr %s200, 8
        %s202 = scalar_lea.vmem [#allocation5], %s201
        %v203 = vld [vmem:[%s180] sm:$0xff]
        %vm204 = vcmask 261120
        %v205 = vsel %vm204, %v203, 0.0
        %206 = vadd.xlane.f32.xlu0 %v205
        %v207 = vpop.xlane.xlu0 %206
        %v208 = vrcp.pop 32.0
        %v209 = vmul.f32 %v207, %v208
        %v210 = vsub.f32 %v203, %v209
        %v211 = vmul.f32 %v210, %v210
        %v212 = vsel %vm204, %v211, 0.0
        %213 = vadd.xlane.f32.xlu0 %v212
        %v214 = vpop.xlane.xlu0 %213
        %v215 = vmul.f32 %v214, %v208
        %v216 = vadd.f32 %v215, 1e-05
        %v217 = vrsqrt.pop %v216
        %v218 = vmul.f32 %v210, %v217
        %v219 = vld [vmem:[%s1] sm:$0x1]
        %v221 = vlaneseq
        %v222 = vshrl.u32 %v221, 7
        %v223 = vsub.s32 0, %v222
        %v224 = vrot.slane %v219, %v223
        %v226 = vmul.f32 %v218, %v224
        %v227 = vld [vmem:[%s2] sm:$0x1]
        %v229 = vlaneseq
        %v230 = vshrl.u32 %v229, 7
        %v231 = vsub.s32 0, %v230
        %v232 = vrot.slane %v227, %v231
        %v234 = vadd.f32 %v226, %v232
        %235 = vst.msk [vmem:[%s202] sm:$0xff] %vm204, %v234
        %s236 = sand.u32 %s112, 1
        %s237 = scalar_lea.sflag [#allocation4], %s236
        %s238 = sand.u32 %s112, 1
        %s239 = smul.addr %s238, 8
        %s240 = scalar_lea.vmem [#allocation5], %s239
        // Predicated region
        $region37: #{tpu_custom_call.1} parent=31 // pred_check
          %p241 = pneg %p122
        $region38: #{tpu_custom_call.1} parent=31 // pred_check_branch
          %243 = sbr.rel (%p241) target = $region40
        $region39: #{tpu_custom_call.1} parent=31 // pred_region
          %s245 = ssub.s32 128, 128
          %246 = vsyncadd %s237, %s245
          %s247 = sadd.s32 %s25, %s24
          %s248 = smul.addr %s247, 128
          %s249 = scalar_lea.hbm %s3, %s248
          %s251 = sshll.u32 %s240, 4
          %s252 = int_to_ptr.vmem [resolvable:$true] %s251
          %254 = dma.vmem_to_hbm [thread:$0]  %s252, 128, %s249, %s237
        $region40: #{tpu_custom_call.1} parent=31 // pred_fallthru
          _
      $region32: #{tpu_custom_call.1} parent=5 // pred_fallthru
        _
      %p255 = scmp.le.s32.totalorder 2, %s15
      // Predicated region
      $region41: #{tpu_custom_call.1} parent=5 // pred_check
        %p256 = pneg %p255
      $region42: #{tpu_custom_call.1} parent=5 // pred_check_branch
        %258 = sbr.rel (%p256) target = $region44
      $region43: #{tpu_custom_call.1} parent=5 // pred_region
        %s259 = ssub.s32 %s15, 2
        // Predicated region
        $region45: #{tpu_custom_call.1} parent=43 // pred_check
          %p260 = pneg %p128
        $region46: #{tpu_custom_call.1} parent=43 // pred_check_branch
          %262 = sbr.rel (%p260) target = $region48
        $region47: #{tpu_custom_call.1} parent=43 // pred_region
          %s263 = sand.u32 %s113, 1
          %s264 = scalar_lea.sflag [#allocation4], %s263
          %s265 = sand.u32 %s113, 1
          %s266 = smul.addr %s265, 8
          %s267 = scalar_lea.vmem [#allocation5], %s266
          %268 = dma.done %s264, 128
        $region48: #{tpu_custom_call.1} parent=43 // pred_fallthru
          _
      $region44: #{tpu_custom_call.1} parent=5 // pred_fallthru
        _
    $region6: #{tpu_custom_call.1} parent=1 // loop_footer
      %s19 = sadd.s32 1, %s15
    $region7: #{tpu_custom_call.1} parent=1 // loop_footer_branch
      %14 = sbr.rel target = $region3
    $region8: #{tpu_custom_call.1} parent=1 // loop_exit
      _
    %269 = vsyncpa [#allocation3], 1
    %s270 = scalar_lea.sflag [#allocation3], 1
    %271 = vsyncpa %s270, 1
    %272 = vsyncpa [#allocation4], 1
    %s273 = scalar_lea.sflag [#allocation4], 1
    %274 = vsyncpa %s273, 1

</llo_original>
